<compile_context>
chip_gen: v7x
topology: tpu7x:2x2x1
jax: 0.10.0
libtpu: 0.0.40
codegen_flags: <defaults>
</compile_context>

<pallas_src>
import jax
import jax.numpy as jnp
from jax.experimental import pallas as pl
from jax.experimental.pallas import tpu as pltpu


def _round_up(x, m):
    return ((x + m - 1) // m) * m


# ---------------------------------------------------------------------------
# Pallas kernel
# ---------------------------------------------------------------------------
def _make_kernel(cat_cols, offsets, compute_dtype):
    """Fused (numeric linear + multihot embedding-linear) kernel.

    cat_cols : static column positions of the categorical ids inside raw x.
    offsets  : static cumulative vocab offsets into the stacked fused table.
    NOTE: like nn.Embedding, ids are assumed in-range [0, n_j); out-of-range ids
    silently select a wrong/zero row instead of raising.
    """
    num_cats = len(cat_cols)

    if num_cats == 0:
        def kernel(x_ref, w_ref, b_ref, out_ref):
            acc = jnp.dot(x_ref[...].astype(compute_dtype), w_ref[...],
                          preferred_element_type=jnp.float32)
            out_ref[...] = acc + b_ref[...]
        return kernel

    def kernel(x_ref, w_ref, tab_ref, b_ref, out_ref):
        x = x_ref[...]                                   # [T, D_orig] f32
        t_rows = x_ref.shape[0]
        v_total = tab_ref.shape[0]

        # Numeric contribution (categorical columns hit zero weight rows).
        acc = jnp.dot(x.astype(compute_dtype), w_ref[...],
                      preferred_element_type=jnp.float32)

        # One combined multi-hot over the stacked vocab: a single hoisted iota,
        # k cheap VPU compares, then ONE MXU call against the pre-fused table.
        iota = jax.lax.broadcasted_iota(jnp.int32, (t_rows, v_total), 1)
        mh = jnp.zeros((t_rows, v_total), compute_dtype)
        for c, off in zip(cat_cols, offsets):
            # ids come from the f32 input (exact), static column slice.
            idx = x[:, c:c + 1].astype(jnp.int32) + off  # [T, 1]
            mh = mh + (idx == iota).astype(compute_dtype)

        acc = acc + jnp.dot(mh, tab_ref[...], preferred_element_type=jnp.float32)

        out_ref[...] = acc + b_ref[...]                  # f32 bias broadcast

    return kernel


def _fused_node_type_forward(x, w_full, fused_table, b, cat_cols, offsets,
                             emb_dim, compute_dtype, max_tile_rows=1024):
    n_nodes, d_orig = x.shape

    # Row tile: biggest reasonable tile (per-step footprint is a few hundred KiB,
    # so VMEM is never the limit) to amortize the ~0.35us/step grid overhead.
    # Rounded to the 8-row sublane granularity; small inputs collapse to one step.
    tile_n = min(_round_up(max(n_nodes, 1), 8), _round_up(max(max_tile_rows, 1), 8))
    grid = (pl.cdiv(n_nodes, tile_n),)

    def row_spec(last):
        return pl.BlockSpec((tile_n, last), lambda i: (i, 0))

    def resident(arr):  # same block every step -> stays VMEM-resident, no re-DMA
        return pl.BlockSpec(arr.shape, lambda i: (0, 0))

    args = [x, w_full]
    in_specs = [row_spec(d_orig), resident(w_full)]
    if len(cat_cols):
        args.append(fused_table)
        in_specs.append(resident(fused_table))
    args.append(b)
    in_specs.append(resident(b))

    return pl.pallas_call(
        _make_kernel(tuple(cat_cols), tuple(offsets), compute_dtype),
        out_shape=jax.ShapeDtypeStruct((n_nodes, emb_dim), jnp.float32),
        grid=grid,
        in_specs=in_specs,
        out_specs=row_spec(emb_dim),
        compiler_params=pltpu.CompilerParams(
            # rows are independent -> shard across both TensorCores on v7x
            dimension_semantics=("parallel",),
            # explicit scoped-VMEM budget, safe on v5e / v6e / v7x
            vmem_limit_bytes=32 * 1024 * 1024),
    )(*args)


# ---------------------------------------------------------------------------
# Parameter preparation (weight scatter + table fusion), done once per node_type
# ---------------------------------------------------------------------------
def _prepare_node_type_params(p, num_cols, cat_cols, d_orig, emb_dim, compute_dtype):
    emb_tables = p["emb_tables"]        # list of [n_j, n_j // 5] f32
    w = p["w"]                          # [d_num + sum(d_j), emb_dim]  (== torch W.T)
    b = p["b"]                          # [1, emb_dim]
    d_num = len(num_cols)

    # Scatter the numeric rows of W into their original column positions.
    w_full = jnp.zeros((d_orig, emb_dim), jnp.float32)
    if d_num:
        w_full = w_full.at[jnp.array(num_cols, dtype=jnp.int32), :].set(w[:d_num])

    # Fold each embedding table through its Linear slab (exact, in f32) and stack.
    fused, offsets, off, vtot = [], [], d_num, 0
    for t in emb_tables:
        d_j = t.shape[1]
        fused.append(t @ w[off:off + d_j])               # [n_j, emb_dim]
        offsets.append(vtot)
        vtot += t.shape[0]
        off += d_j
    fused_table = (jnp.concatenate(fused, axis=0) if fused
                   else jnp.zeros((1, emb_dim), jnp.float32))

    return (w_full.astype(compute_dtype),
            fused_table.astype(compute_dtype),
            b.astype(jnp.float32),
            offsets)


# ---------------------------------------------------------------------------
# Module-level wrapper (mirrors feature_emb_layer.forward)
# ---------------------------------------------------------------------------
def feature_emb_layer_forward(inputs, params, config, compute_dtype=jnp.bfloat16,
                              max_tile_rows=1024):
    emb_dim = config["emb_dim"]
    outputs = {}
    for nt in config["node_types"]:
        x = inputs[nt].astype(jnp.float32)               # raw [N, D_orig]
        d_orig = x.shape[1]
        cat_cols = list(config["category_feat_indices"][nt])
        num_cols = [i for i in range(d_orig) if i not in cat_cols]
        w_full, fused_table, b, offsets = _prepare_node_type_params(
            params[nt], num_cols, cat_cols, d_orig, emb_dim, compute_dtype)
        outputs[nt] = _fused_node_type_forward(
            x, w_full, fused_table, b, cat_cols, offsets, emb_dim, compute_dtype,
            max_tile_rows=max_tile_rows)
    return outputs


# ---------------------------------------------------------------------------
# References
# ---------------------------------------------------------------------------
def reference_forward(inputs, params, config):
    """Pure f32 reference mirroring the PyTorch math exactly."""
    outputs = {}
    for nt in config["node_types"]:
        x = inputs[nt].astype(jnp.float32)
        cat_cols = list(config["category_feat_indices"][nt])
        num_cols = [i for i in range(x.shape[1]) if i not in cat_cols]
        x_num = x[:, jnp.array(num_cols, dtype=jnp.int32)]
        embs = []
        for j, table in enumerate(params[nt]["emb_tables"]):
            idx = x[:, cat_cols[j]].astype(jnp.int32)
            embs.append(table[idx])
        cat = jnp.concatenate([x_num] + embs, axis=1)
        outputs[nt] = cat @ params[nt]["w"] + params[nt]["b"]
    return outputs


def matched_precision_reference(inputs, params, config, compute_dtype=jnp.bfloat16):
    """Same math and operand dtypes as the kernel (tight-tolerance check)."""
    outputs = {}
    for nt in config["node_types"]:
        x = inputs[nt].astype(jnp.float32)
        d_orig = x.shape[1]
        cat_cols = list(config["category_feat_indices"][nt])
        num_cols = [i for i in range(d_orig) if i not in cat_cols]
        w_full, tab, b, offsets = _prepare_node_type_params(
            params[nt], num_cols, cat_cols, d_orig, config["emb_dim"], compute_dtype)
        acc = jnp.dot(x.astype(compute_dtype), w_full,
                      preferred_element_type=jnp.float32)
        if cat_cols:
            v_total = tab.shape[0]
            mh = jnp.zeros((x.shape[0], v_total), jnp.float32)
            for j, c in enumerate(cat_cols):
                idx = x[:, c].astype(jnp.int32) + offsets[j]
                mh = mh + jax.nn.one_hot(idx, v_total, dtype=jnp.float32)
            acc = acc + jnp.dot(mh.astype(compute_dtype), tab,
                                preferred_element_type=jnp.float32)
        outputs[nt] = acc + b
    return outputs


# ---------------------------------------------------------------------------
# Deterministic parameter / input construction
# ---------------------------------------------------------------------------
def build_params(key, config):
    params = {}
    for nt in config["node_types"]:
        d_orig = config["node_in_feats_dims"][nt]
        cat_cols = config["category_feat_indices"][nt]
        cat_nums = config["category_feat_nums"][nt]
        d_num = d_orig - len(cat_cols)
        emb_dims = [int(n) // 5 for n in cat_nums]
        d_total = d_num + sum(emb_dims)

        key, kw, kb = jax.random.split(key, 3)
        emb_tables = []
        for n_j, d_j in zip(cat_nums, emb_dims):
            key, kt = jax.random.split(key)
            emb_tables.append(jax.random.normal(kt, (int(n_j), d_j), jnp.float32))

        params[nt] = {
            "emb_tables": emb_tables,
            # stored as [in, out] == torch_W.T so the math is x @ w
            "w": jax.random.normal(kw, (d_total, config["emb_dim"]), jnp.float32)
                 * (1.0 / jnp.sqrt(d_total)),
            "b": jax.random.normal(kb, (1, config["emb_dim"]), jnp.float32) * 0.1,
        }
    return params


def build_inputs(key, config, n_nodes=8):
    inputs = {}
    for nt in config["node_types"]:
        d_orig = config["node_in_feats_dims"][nt]
        cat_cols = config["category_feat_indices"][nt]
        cat_nums = config["category_feat_nums"][nt]
        key, kx = jax.random.split(key)
        x = jax.random.normal(kx, (n_nodes, d_orig), jnp.float32)
        # write valid integer category ids into the categorical columns
        for c, n_j in zip(cat_cols, cat_nums):
            key, ki = jax.random.split(key)
            ids = jax.random.randint(ki, (n_nodes,), 0, int(n_j)).astype(jnp.float32)
            x = x.at[:, c].set(ids)
        inputs[nt] = x
    return inputs


if __name__ == "__main__":
    config = {
        "node_types": ["user", "item"],
        "node_in_feats_dims": {"user": 6, "item": 5},
        "category_feat_indices": {"user": [1, 4], "item": [2]},
        "category_feat_nums": {"user": [10, 15], "item": [20]},  # emb dims 2,3 and 4
        "emb_dim": 20,
    }

    key = jax.random.PRNGKey(0)
    kp, ki = jax.random.split(key)
    params = build_params(kp, config)
    # 37 rows with a 16-row tile exercises a multi-step grid plus a padded edge block.
    n_nodes = 37
    inputs = build_inputs(ki, config, n_nodes=n_nodes)

    out = feature_emb_layer_forward(inputs, params, config, max_tile_rows=16)
    out = {k: jax.block_until_ready(v) for k, v in out.items()}

    ref_f32 = reference_forward(inputs, params, config)
    ref_bf16 = matched_precision_reference(inputs, params, config)
    for nt in config["node_types"]:
        assert out[nt].shape == (n_nodes, config["emb_dim"]), out[nt].shape
        # tight check against the same-precision (bf16-operand, f32-acc) math
        assert jnp.allclose(out[nt], ref_bf16[nt], rtol=1e-3, atol=1e-3), nt
        # loose check against the exact PyTorch-equivalent f32 math
        # (bf16 MXU operands are a deliberate perf tradeoff)
        assert jnp.allclose(out[nt], ref_f32[nt], rtol=5e-2, atol=5e-2), nt

    print("KERNEL_OK")
</pallas_src>

<mosaic_0001>
module attributes {stable_mosaic.version = 11 : i64} {
  func.func @kernel(%arg0: i32, %arg1: memref<16x6xf32, #tpu.memory_space<vmem>>, %arg2: memref<6x20xbf16, #tpu.memory_space<vmem>>, %arg3: memref<25x20xbf16, #tpu.memory_space<vmem>>, %arg4: memref<1x20xf32, #tpu.memory_space<vmem>>, %arg5: memref<16x20xf32, #tpu.memory_space<vmem>>) attributes {dimension_semantics = [#tpu.dimension_semantics<parallel>], iteration_bounds = array<i64: 3>, scalar_prefetch = 0 : i64, scratch_operands = 0 : i64, tpu.core_type = #tpu.core_type<tc>, window_params = [{transform_indices = @transform_0, window_bounds = array<i64: 16, 6>}, {pipeline_mode = #tpu.pipeline_mode<synchronous>, transform_indices = @transform_1, window_bounds = array<i64: 6, 20>}, {pipeline_mode = #tpu.pipeline_mode<synchronous>, transform_indices = @transform_2, window_bounds = array<i64: 25, 20>}, {pipeline_mode = #tpu.pipeline_mode<synchronous>, transform_indices = @transform_3, window_bounds = array<i64: 1, 20>}, {transform_indices = @transform_4, window_bounds = array<i64: 16, 20>}]} {
    %c0 = arith.constant 0 : index
    %c0_0 = arith.constant 0 : index
    %0 = vector.load %arg1[%c0, %c0_0] : memref<16x6xf32, #tpu.memory_space<vmem>>, vector<16x6xf32>
    %1 = arith.truncf %0 : vector<16x6xf32> to vector<16x6xbf16>
    %c0_1 = arith.constant 0 : index
    %c0_2 = arith.constant 0 : index
    %2 = vector.load %arg2[%c0_1, %c0_2] : memref<6x20xbf16, #tpu.memory_space<vmem>>, vector<6x20xbf16>
    %cst = arith.constant dense<0.000000e+00> : vector<16x20xf32>
    %3 = tpu.matmul %1, %2, %cst {dimension_numbers = #tpu.dot_dimension_numbers<[1], [0], [0], [1], [0, 0, 1, 1], [], []>} : vector<16x6xbf16>, vector<6x20xbf16>, vector<16x20xf32> -> vector<16x20xf32>
    %4 = tpu.iota {dimensions = array<i32: 1>} : vector<16x25xi32>
    %cst_3 = arith.constant 0.000000e+00 : bf16
    %5 = vector.broadcast %cst_3 : bf16 to vector<16x25xbf16>
    %6 = vector.extract_strided_slice %0 {offsets = [0, 1], sizes = [16, 1], strides = [1, 1]} : vector<16x6xf32> to vector<16x1xf32>
    %7 = arith.fptosi %6 : vector<16x1xf32> to vector<16x1xi32>
    %c0_i32 = arith.constant 0 : i32
    %8 = vector.broadcast %c0_i32 : i32 to vector<16x1xi32>
    %9 = arith.addi %7, %8 : vector<16x1xi32>
    %10 = vector.broadcast %9 : vector<16x1xi32> to vector<16x25xi32>
    %11 = arith.cmpi eq, %10, %4 : vector<16x25xi32>
    %12 = arith.extui %11 : vector<16x25xi1> to vector<16x25xi32>
    %13 = arith.sitofp %12 : vector<16x25xi32> to vector<16x25xf32>
    %14 = arith.truncf %13 : vector<16x25xf32> to vector<16x25xbf16>
    %15 = arith.addf %5, %14 : vector<16x25xbf16>
    %16 = vector.extract_strided_slice %0 {offsets = [0, 4], sizes = [16, 1], strides = [1, 1]} : vector<16x6xf32> to vector<16x1xf32>
    %17 = arith.fptosi %16 : vector<16x1xf32> to vector<16x1xi32>
    %c10_i32 = arith.constant 10 : i32
    %18 = vector.broadcast %c10_i32 : i32 to vector<16x1xi32>
    %19 = arith.addi %17, %18 : vector<16x1xi32>
    %20 = vector.broadcast %19 : vector<16x1xi32> to vector<16x25xi32>
    %21 = arith.cmpi eq, %20, %4 : vector<16x25xi32>
    %22 = arith.extui %21 : vector<16x25xi1> to vector<16x25xi32>
    %23 = arith.sitofp %22 : vector<16x25xi32> to vector<16x25xf32>
    %24 = arith.truncf %23 : vector<16x25xf32> to vector<16x25xbf16>
    %25 = arith.addf %15, %24 : vector<16x25xbf16>
    %c0_4 = arith.constant 0 : index
    %c0_5 = arith.constant 0 : index
    %26 = vector.load %arg3[%c0_4, %c0_5] : memref<25x20xbf16, #tpu.memory_space<vmem>>, vector<25x20xbf16>
    %cst_6 = arith.constant dense<0.000000e+00> : vector<16x20xf32>
    %27 = tpu.matmul %25, %26, %cst_6 {dimension_numbers = #tpu.dot_dimension_numbers<[1], [0], [0], [1], [0, 0, 1, 1], [], []>} : vector<16x25xbf16>, vector<25x20xbf16>, vector<16x20xf32> -> vector<16x20xf32>
    %28 = arith.addf %3, %27 : vector<16x20xf32>
    %c0_7 = arith.constant 0 : index
    %c0_8 = arith.constant 0 : index
    %29 = vector.load %arg4[%c0_7, %c0_8] : memref<1x20xf32, #tpu.memory_space<vmem>>, vector<1x20xf32>
    %30 = vector.broadcast %29 : vector<1x20xf32> to vector<16x20xf32>
    %31 = arith.addf %28, %30 : vector<16x20xf32>
    %c0_9 = arith.constant 0 : index
    %c0_10 = arith.constant 0 : index
    %32 = vector.load %arg5[%c0_9, %c0_10] : memref<16x20xf32, #tpu.memory_space<vmem>>, vector<16x20xf32>
    tpu.vector_store %arg5[%c0_9, %c0_10], %31 {strides = array<i32>} : memref<16x20xf32, #tpu.memory_space<vmem>>, vector<16x20xf32>,
    return
  }
  func.func @transform_0(%arg0: i32) -> (i32, i32) {
    %c0_i32 = arith.constant 0 : i32
    %c0_i32_0 = arith.constant 0 : i32
    return %arg0, %c0_i32 : i32, i32
  }
  func.func @transform_1(%arg0: i32) -> (i32, i32) {
    %c0_i32 = arith.constant 0 : i32
    %c0_i32_0 = arith.constant 0 : i32
    %c0_i32_1 = arith.constant 0 : i32
    return %c0_i32, %c0_i32_0 : i32, i32
  }
  func.func @transform_2(%arg0: i32) -> (i32, i32) {
    %c0_i32 = arith.constant 0 : i32
    %c0_i32_0 = arith.constant 0 : i32
    %c0_i32_1 = arith.constant 0 : i32
    return %c0_i32, %c0_i32_0 : i32, i32
  }
  func.func @transform_3(%arg0: i32) -> (i32, i32) {
    %c0_i32 = arith.constant 0 : i32
    %c0_i32_0 = arith.constant 0 : i32
    %c0_i32_1 = arith.constant 0 : i32
    return %c0_i32, %c0_i32_0 : i32, i32
  }
  func.func @transform_4(%arg0: i32) -> (i32, i32) {
    %c0_i32 = arith.constant 0 : i32
    %c0_i32_0 = arith.constant 0 : i32
    return %arg0, %c0_i32 : i32, i32
  }
}

</mosaic_0001>

<llo_original>
// kernel: tpu_custom_call.1
$region0: #{tpu_custom_call.1}
  #allocation0 [shape = 'u32[]', space=smem, size = 0x4, offset = 0x4, fixed_abs, tag = 'smem constant byte address 0x4 - core index']
  #allocation1 [shape = 'u32[144,128]{1,0:T(1,128)}', space=vmem, size = 0x12000, scoped, tag = 'internal scratch']
  %s0 = inlined_call_operand.vmem [shape: f32[37,6], index: 0, kind: input, shape index: {}]
  %s1 = inlined_call_operand.vmem [shape: bf16[6,20], index: 1, kind: input, shape index: {}]
  %s2 = inlined_call_operand.vmem [shape: bf16[25,20], index: 2, kind: input, shape index: {}]
  %s3 = inlined_call_operand.vmem [shape: f32[1,20], index: 3, kind: input, shape index: {}]
  %s4 = inlined_call_operand.vmem [shape: f32[37,20], index: 4, kind: output, shape index: {}]
  %s5 = sld [smem:[#allocation0]]
  $region97: #{tpu_custom_call.1} parent=0
    _
  %s7 = ssub.s32 1, %s5
  %s8 = scalar_select 0, %s7, %s5
  $region1: #{tpu_custom_call.1} parent=0
    #allocation2 [shape = 'u8[16384]{0}', space=vmem, size = 0x4000, scoped, tag = 'output window, operand 0']
    loop: start=0, step=1, limit=5
    $region2: #{tpu_custom_call.1} parent=1 // loop_pre_header
      _
    $region3: #{tpu_custom_call.1} parent=1 // loop_header
      %s10 = sphi 0, %s14
      %p11 = scmp.ge.s32.totalorder %s10, 5
      %s20 = sphi 0, %s22
      %s23 = sphi 0, %s20
      %s24 = sphi 0, %s23
      %s40 = sphi 0, %s24
      %s44 = sphi 0, %s44
      %s46 = sphi 0, %s44
      %s47 = sphi 0, %s46
      %s61 = sphi 0, %s47
      %s65 = sphi 0, %s65
      %s67 = sphi 0, %s65
      %s68 = sphi 0, %s67
      %s82 = sphi 0, %s68
      %s86 = sphi 0, %s86
      %s88 = sphi 0, %s86
      %s89 = sphi 0, %s88
      %s103 = sphi 0, %s89
      %s109 = sphi 0, %s111
      %s112 = sphi 0, %s109
      %s113 = sphi 0, %s112
      %s129 = sphi 0, %s113
    $region4: #{tpu_custom_call.1} parent=1 // loop_header_branch
      %13 = sbr.rel (%p11) target = $region8
    $region5: #{tpu_custom_call.1} parent=1 // loop_body
      %s15 = ssub.s32 %s10, 1
      %s16 = ssub.s32 %s10, 2
      %s17 = sadd.s32 %s10, 1
      %s18 = ssub.s32 %s10, %s17
      %p19 = scmp.eq.s32.totalorder %s18, 0
      %s21 = sadd.s32 %s20, 1
      %s22 = scalar_select %p19, %s20, %s21
      %p25 = pneg %p19
      %p26 = scmp.eq.s32.totalorder %s10, 2
      %p27 = por %p25, %p26
      %p28 = scmp.ne.s32.totalorder %s20, %s23
      %p29 = scmp.eq.s32.totalorder %s10, 0
      %p30 = por %p28, %p29
      %p31 = scmp.ne.s32.totalorder %s20, %s23
      %p32 = scmp.eq.s32.totalorder %s15, 2
      %p33 = por %p31, %p32
      %p34 = scmp.ne.s32.totalorder %s23, %s24
      %p35 = scmp.eq.s32.totalorder %s15, 0
      %p36 = por %p34, %p35
      %p37 = scmp.ne.s32.totalorder %s23, %s24
      %p38 = scmp.eq.s32.totalorder %s16, 2
      %p39 = por %p37, %p38
      %p41 = scmp.ne.s32.totalorder %s24, %s40
      %p42 = scmp.eq.s32.totalorder %s16, 0
      %p43 = por %p41, %p42
      %s45 = sadd.s32 %s44, 1
      %p48 = scmp.eq.s32.totalorder %s10, 2
      %p49 = scmp.ne.s32.totalorder %s44, %s46
      %p50 = scmp.eq.s32.totalorder %s10, 0
      %p51 = por %p49, %p50
      %p52 = scmp.ne.s32.totalorder %s44, %s46
      %p53 = scmp.eq.s32.totalorder %s15, 2
      %p54 = por %p52, %p53
      %p55 = scmp.ne.s32.totalorder %s46, %s47
      %p56 = scmp.eq.s32.totalorder %s15, 0
      %p57 = por %p55, %p56
      %p58 = scmp.ne.s32.totalorder %s46, %s47
      %p59 = scmp.eq.s32.totalorder %s16, 2
      %p60 = por %p58, %p59
      %p62 = scmp.ne.s32.totalorder %s47, %s61
      %p63 = scmp.eq.s32.totalorder %s16, 0
      %p64 = por %p62, %p63
      %s66 = sadd.s32 %s65, 1
      %p69 = scmp.eq.s32.totalorder %s10, 2
      %p70 = scmp.ne.s32.totalorder %s65, %s67
      %p71 = scmp.eq.s32.totalorder %s10, 0
      %p72 = por %p70, %p71
      %p73 = scmp.ne.s32.totalorder %s65, %s67
      %p74 = scmp.eq.s32.totalorder %s15, 2
      %p75 = por %p73, %p74
      %p76 = scmp.ne.s32.totalorder %s67, %s68
      %p77 = scmp.eq.s32.totalorder %s15, 0
      %p78 = por %p76, %p77
      %p79 = scmp.ne.s32.totalorder %s67, %s68
      %p80 = scmp.eq.s32.totalorder %s16, 2
      %p81 = por %p79, %p80
      %p83 = scmp.ne.s32.totalorder %s68, %s82
      %p84 = scmp.eq.s32.totalorder %s16, 0
      %p85 = por %p83, %p84
      %s87 = sadd.s32 %s86, 1
      %p90 = scmp.eq.s32.totalorder %s10, 2
      %p91 = scmp.ne.s32.totalorder %s86, %s88
      %p92 = scmp.eq.s32.totalorder %s10, 0
      %p93 = por %p91, %p92
      %p94 = scmp.ne.s32.totalorder %s86, %s88
      %p95 = scmp.eq.s32.totalorder %s15, 2
      %p96 = por %p94, %p95
      %p97 = scmp.ne.s32.totalorder %s88, %s89
      %p98 = scmp.eq.s32.totalorder %s15, 0
      %p99 = por %p97, %p98
      %p100 = scmp.ne.s32.totalorder %s88, %s89
      %p101 = scmp.eq.s32.totalorder %s16, 2
      %p102 = por %p100, %p101
      %p104 = scmp.ne.s32.totalorder %s89, %s103
      %p105 = scmp.eq.s32.totalorder %s16, 0
      %p106 = por %p104, %p105
      %s107 = ssub.s32 %s10, %s17
      %p108 = scmp.eq.s32.totalorder %s107, 0
      %s110 = sadd.s32 %s109, 1
      %s111 = scalar_select %p108, %s109, %s110
      %p114 = pneg %p108
      %p115 = scmp.eq.s32.totalorder %s10, 2
      %p116 = por %p114, %p115
      %p117 = scmp.ne.s32.totalorder %s109, %s112
      %p118 = scmp.eq.s32.totalorder %s10, 0
      %p119 = por %p117, %p118
      %p120 = scmp.ne.s32.totalorder %s109, %s112
      %p121 = scmp.eq.s32.totalorder %s15, 2
      %p122 = por %p120, %p121
      %p123 = scmp.ne.s32.totalorder %s112, %s113
      %p124 = scmp.eq.s32.totalorder %s15, 0
      %p125 = por %p123, %p124
      %p126 = scmp.ne.s32.totalorder %s112, %s113
      %p127 = scmp.eq.s32.totalorder %s16, 2
      %p128 = por %p126, %p127
      %p130 = scmp.ne.s32.totalorder %s113, %s129
      %p131 = scmp.eq.s32.totalorder %s16, 0
      %p132 = por %p130, %p131
      %p133 = scmp.le.s32.totalorder 1, %s10
      %p134 = scmp.lt.s32.totalorder %s10, 4
      %p135 = pnand %p133, %p134
      %p136 = pneg %p135
      // Predicated region
      $region9: #{tpu_custom_call.1} parent=5 // pred_check
        _
      $region10: #{tpu_custom_call.1} parent=5 // pred_check_branch
        %138 = sbr.rel (%p135) target = $region12
      $region11: #{tpu_custom_call.1} parent=5 // pred_region
        %s139 = ssub.s32 %s10, 1
        // Predicated region
        $region13: #{tpu_custom_call.1} parent=11 // pred_check
          %p140 = pneg %p57
        $region14: #{tpu_custom_call.1} parent=11 // pred_check_branch
          %142 = sbr.rel (%p140) target = $region16
        $region15: #{tpu_custom_call.1} parent=11 // pred_region
          _
        $region16: #{tpu_custom_call.1} parent=11 // pred_fallthru
          _
        // Predicated region
        $region17: #{tpu_custom_call.1} parent=11 // pred_check
          %p143 = pneg %p78
        $region18: #{tpu_custom_call.1} parent=11 // pred_check_branch
          %145 = sbr.rel (%p143) target = $region20
        $region19: #{tpu_custom_call.1} parent=11 // pred_region
          _
        $region20: #{tpu_custom_call.1} parent=11 // pred_fallthru
          _
        // Predicated region
        $region21: #{tpu_custom_call.1} parent=11 // pred_check
          %p146 = pneg %p99
        $region22: #{tpu_custom_call.1} parent=11 // pred_check_branch
          %148 = sbr.rel (%p146) target = $region24
        $region23: #{tpu_custom_call.1} parent=11 // pred_region
          _
        $region24: #{tpu_custom_call.1} parent=11 // pred_fallthru
          _
      $region12: #{tpu_custom_call.1} parent=5 // pred_fallthru
        _
      %p149 = scmp.lt.s32.totalorder %s10, 3
      // Predicated region
      $region25: #{tpu_custom_call.1} parent=5 // pred_check
        %p150 = pneg %p149
      $region26: #{tpu_custom_call.1} parent=5 // pred_check_branch
        %152 = sbr.rel (%p150) target = $region28
      $region27: #{tpu_custom_call.1} parent=5 // pred_region
        // Predicated region
        $region29: #{tpu_custom_call.1} parent=27 // pred_check
          %p153 = pneg %p30
        $region30: #{tpu_custom_call.1} parent=27 // pred_check_branch
          %155 = sbr.rel (%p153) target = $region32
        $region31: #{tpu_custom_call.1} parent=27 // pred_region
          %s156 = smul.u32 2, %s10
          %s157 = ssub.s32 5, %s156
          %p158 = scmp.lt.s32.totalorder %s157, 2
          %s159 = scalar_select %p158, %s157, 2
          %s160 = smul.u32 128, %s159
          %p161 = scmp.lt.s32.totalorder %s156, 4
          %s162 = scalar_select %p161, %s156, 4
          %s163 = smul.addr %s162, 8
          %s164 = scalar_lea.vmem %s0, %s163
          %s165 = smul.u32 2, %s10
          %s166 = ssub.s32 5, %s165
          %p167 = scmp.lt.s32.totalorder %s166, 2
          %s168 = scalar_select %p167, %s166, 2
          %s169 = smul.u32 128, %s168
        $region32: #{tpu_custom_call.1} parent=27 // pred_fallthru
          _
      $region28: #{tpu_custom_call.1} parent=5 // pred_fallthru
        _
      %p170 = scmp.le.s32.totalorder 1, %s10
      %p171 = scmp.lt.s32.totalorder %s10, 4
      %p172 = pnand %p170, %p171
      %p173 = pneg %p172
      // Predicated region
      $region33: #{tpu_custom_call.1} parent=5 // pred_check
        _
      $region34: #{tpu_custom_call.1} parent=5 // pred_check_branch
        %175 = sbr.rel (%p172) target = $region36
      $region35: #{tpu_custom_call.1} parent=5 // pred_region
        %s176 = ssub.s32 %s10, 1
        %s177 = smul.u32 2, %s15
        %s178 = ssub.s32 5, %s177
        %p179 = scmp.lt.s32.totalorder %s178, 2
        %s180 = scalar_select %p179, %s178, 2
        %s181 = smul.u32 128, %s180
        %p182 = scmp.lt.s32.totalorder %s177, 4
        %s183 = scalar_select %p182, %s177, 4
        %s184 = smul.addr %s183, 8
        %s185 = scalar_lea.vmem %s0, %s184
        %p186 = pneg %p36
        %p187 = pneg %p33
        %p188 = pneg %p57
        %p189 = pneg %p54
        %p190 = pneg %p78
        %p191 = pneg %p75
        %p192 = pneg %p99
        %p193 = pneg %p96
        %p194 = pneg %p125
        %p195 = pneg %p122
        %s196 = sand.u32 %s112, 1
        %s197 = sand.u32 %s112, 1
        %s198 = smul.addr %s197, 16
        %s199 = scalar_lea.vmem [#allocation2], %s198
        %s200 = smul.u32 2, %s15
        %s201 = ssub.s32 5, %s200
        %p202 = scmp.lt.s32.totalorder %s201, 2
        %s203 = scalar_select %p202, %s201, 2
        %s204 = smul.u32 128, %s203
        %p205 = scmp.lt.s32.totalorder %s200, 4
        %s206 = scalar_select %p205, %s200, 4
        %s207 = smul.addr %s206, 8
        %s208 = scalar_lea.vmem %s0, %s207
        %s209 = smul.u32 2, %s15
        %s210 = ssub.s32 5, %s209
        %p211 = scmp.lt.s32.totalorder %s210, 2
        %s212 = scalar_select %p211, %s210, 2
        %s213 = smul.u32 128, %s212
        %s214 = smul.u32 2, %s15
        %s215 = ssub.s32 5, %s214
        %p216 = scmp.lt.s32.totalorder %s215, 2
        %s217 = scalar_select %p216, %s215, 2
        %s218 = smul.u32 128, %s217
        %v220 = vld [vmem:[%s208] sm:$0xff]
        %v221 = vld [vmem:[%s208 + $0x8] sm:$0xff]
        %v222 = vpack.c.bf16 %v221, %v220
        %v223 = vld [vmem:[%s1] sm:$0x7]
        %v224 = vlaneseq
        %v225 = vand.u32 %v224, 127
        %v226 = vcvt.f32.s32.to.zero.pseudo %v220
        %v227 = vcvt.f32.s32.to.zero.pseudo %v221
        %228 = vset.pattern.permute.xlu0 1
        %229 = vperm.xlu0 %228, %v226
        %v230 = vpop.permute.xlu0 %229
        %231 = vset.pattern.permute.xlu0 1
        %232 = vperm.xlu0 %231, %v227
        %v233 = vpop.permute.xlu0 %232
        %vm234 = vcmp.eq.s32.totalorder %v230, %v225
        %vm235 = vcmp.eq.s32.totalorder %v233, %v225
        %v236 = vsel %vm234, 1, 0
        %v237 = vsel %vm235, 1, 0
        %v238 = vcvt.s32.f32 %v236
        %v239 = vcvt.s32.f32 %v237
        %v240 = vpack.c.bf16 %v239, %v238
        %v241 = vadd.bf16 %v240, 0
        %v242 = vadd.s32 %v226, 10
        %v243 = vadd.s32 %v227, 10
        %244 = vset.pattern.permute.xlu0 4
        %245 = vperm.xlu0 %244, %v242
        %v246 = vpop.permute.xlu0 %245
        %247 = vset.pattern.permute.xlu0 4
        %248 = vperm.xlu0 %247, %v243
        %v249 = vpop.permute.xlu0 %248
        %vm250 = vcmp.eq.s32.totalorder %v246, %v225
        %vm251 = vcmp.eq.s32.totalorder %v249, %v225
        %v252 = vsel %vm250, 1, 0
        %v253 = vsel %vm251, 1, 0
        %v254 = vcvt.s32.f32 %v252
        %v255 = vcvt.s32.f32 %v253
        %v256 = vpack.c.bf16 %v255, %v254
        %v257 = vadd.bf16 %v241, %v256
        %v258 = vld [vmem:[%s2] sm:$0xf]
        %v259 = vld [vmem:[%s2 + $0x4] sm:$0xf]
        %v260 = vld [vmem:[%s2 + $0x8] sm:$0xf]
        %v261 = vld [vmem:[%s2 + $0xc] sm:$0x1]
        %v266 = vunpack.c.l.b16 %v258
        %v267 = vunpack.c.l.b16 %v259
        %v268 = vunpack.c.l.b16 %v260
        %v269 = vunpack.c.l.b16 %v261
        %v270 = vpack.c.b16 %v267, %v266
        %v271 = vpack.c.b16 %v269, %v268
        %vm273 = vcmask 203776
        %v275 = vsel %vm273, %v257, 0
        %vm277 = vcmask 1043456
        %vm278 = vcmask 1044480
        %v279 = vsel %vm277, 4294967295, 65535
        %v280 = vsel %vm278, %v279, 0
        %v282 = vand.u32 %v271, %v280
        %284 = vmatprep.subr.bf16.mxu0 0
        %285 = vmatpush1.bf16.msra.mxu0 %v270
        %286 = vmatprep.subr.bf16.mxu0 0
        %287 = vmatpush1.bf16.msra.mxu0 %v282
        %288 = vmatprep.subr.bf16.mxu0 0
        %289 = vmatpush1.bf16.msra.mxu0 0
        %290 = vmatprep.subr.bf16.mxu0 0
        %291 = vmatpush1.bf16.msra.mxu0 0
        %292 = vmatprep.subr.bf16.mxu0 0
        %293 = vmatpush1.bf16.msra.mxu0 0
        %294 = vmatprep.subr.bf16.mxu0 0
        %295 = vmatpush1.bf16.msra.mxu0 0
        %296 = vmatprep.subr.bf16.mxu0 0
        %297 = vmatpush1.bf16.msra.mxu0 0
        %298 = vmatprep.subr.bf16.mxu0 0
        %299 = vmatpush1.bf16.msra.mxu0 0
        %300 = vmatprep.subr.bf16.mxu0 0
        %301 = vmatpush1.bf16.msra.mxu0 0
        %302 = vmatprep.subr.bf16.mxu0 0
        %303 = vmatpush1.bf16.msra.mxu0 0
        %304 = vmatprep.subr.bf16.mxu0 0
        %305 = vmatpush1.bf16.msra.mxu0 0
        %306 = vmatprep.subr.bf16.mxu0 0
        %307 = vmatpush1.bf16.msra.mxu0 0
        %308 = vmatprep.subr.bf16.mxu0 0
        %309 = vmatpush1.bf16.msra.mxu0 0
        %310 = vmatprep.subr.bf16.mxu0 0
        %311 = vmatpush1.bf16.msra.mxu0 0
        %312 = vmatprep.subr.bf16.mxu0 0
        %313 = vmatpush1.bf16.msra.mxu0 0
        %314 = vmatprep.subr.bf16.mxu0 0
        %315 = vmatpush1.bf16.msra.mxu0 0
        %316 = vmatprep.mubr.bf16.mxu0 0
        %317 = vmatmul.mubr.bf16.gmra.mrb[0].mxu0 %v275
        %v318 = vpop.f32.mrb[0].mxu0
        %v319 = vadd.f32 0.0, %v318
        %v320 = vpop.f32.mrb[0].mxu0
        %v321 = vpop.f32.mrb[0].mxu0
        %v322 = vadd.f32 0.0, %v321
        %v323 = vpop.f32.mrb[0].mxu0
        %324 = vdwg.mxu0
        %vm325 = vcmask 48128
        %v327 = vsel %vm325, %v222, 0
        %vm329 = vcmask 1042432
        %v331 = vsel %vm329, %v223, 0
        %333 = vmatprep.subr.bf16.mxu0 0
        %334 = vmatpush1.bf16.msra.mxu0 %v331
        %335 = vmatprep.subr.bf16.mxu0 0
        %336 = vmatpush1.bf16.msra.mxu0 0
        %337 = vmatprep.subr.bf16.mxu0 0
        %338 = vmatpush1.bf16.msra.mxu0 0
        %339 = vmatprep.subr.bf16.mxu0 0
        %340 = vmatpush1.bf16.msra.mxu0 0
        %341 = vmatprep.subr.bf16.mxu0 0
        %342 = vmatpush1.bf16.msra.mxu0 0
        %343 = vmatprep.subr.bf16.mxu0 0
        %344 = vmatpush1.bf16.msra.mxu0 0
        %345 = vmatprep.subr.bf16.mxu0 0
        %346 = vmatpush1.bf16.msra.mxu0 0
        %347 = vmatprep.subr.bf16.mxu0 0
        %348 = vmatpush1.bf16.msra.mxu0 0
        %349 = vmatprep.subr.bf16.mxu0 0
        %350 = vmatpush1.bf16.msra.mxu0 0
        %351 = vmatprep.subr.bf16.mxu0 0
        %352 = vmatpush1.bf16.msra.mxu0 0
        %353 = vmatprep.subr.bf16.mxu0 0
        %354 = vmatpush1.bf16.msra.mxu0 0
        %355 = vmatprep.subr.bf16.mxu0 0
        %356 = vmatpush1.bf16.msra.mxu0 0
        %357 = vmatprep.subr.bf16.mxu0 0
        %358 = vmatpush1.bf16.msra.mxu0 0
        %359 = vmatprep.subr.bf16.mxu0 0
        %360 = vmatpush1.bf16.msra.mxu0 0
        %361 = vmatprep.subr.bf16.mxu0 0
        %362 = vmatpush1.bf16.msra.mxu0 0
        %363 = vmatprep.subr.bf16.mxu0 0
        %364 = vmatpush1.bf16.msra.mxu0 0
        %365 = vmatprep.mubr.bf16.mxu0 0
        %366 = vmatmul.mubr.bf16.gmra.mrb[0].mxu0 %v327
        %v367 = vpop.f32.mrb[0].mxu0
        %v368 = vadd.f32 %v319, %v367
        %v369 = vpop.f32.mrb[0].mxu0
        %v370 = vpop.f32.mrb[0].mxu0
        %v371 = vadd.f32 %v322, %v370
        %v372 = vpop.f32.mrb[0].mxu0
        %373 = vdwg.mxu0
        %v374 = vld [vmem:[%s3] sm:$0x1]
        %v376 = vlaneseq
        %v377 = vshrl.u32 %v376, 7
        %v378 = vsub.s32 0, %v377
        %v379 = vrot.slane %v374, %v378
        %v381 = vadd.f32 %v368, %v379
        %v382 = vadd.f32 %v371, %v379
        %vm383 = vcmask 162816
        %384 = vst.msk [vmem:[%s199] sm:$0xff] %vm383, %v381
        %385 = vst.msk [vmem:[%s199 + $0x8] sm:$0xff] %vm383, %v382
        %s386 = sand.u32 %s112, 1
        %s387 = sand.u32 %s112, 1
        %s388 = smul.addr %s387, 16
        %s389 = scalar_lea.vmem [#allocation2], %s388
        // Predicated region
        $region37: #{tpu_custom_call.1} parent=35 // pred_check
          %p390 = pneg %p122
        $region38: #{tpu_custom_call.1} parent=35 // pred_check_branch
          %392 = sbr.rel (%p390) target = $region40
        $region39: #{tpu_custom_call.1} parent=35 // pred_region
          %s393 = smul.u32 2, %s15
          %s394 = ssub.s32 5, %s393
          %p395 = scmp.lt.s32.totalorder %s394, 2
          %s396 = scalar_select %p395, %s394, 2
          %s397 = smul.u32 128, %s396
          %p398 = scmp.ne.s32.totalorder 0, %s397
          %s399 = smul.addr %s393, 8
          %s400 = scalar_lea.vmem %s4, %s399
          // Predicated region
          $region41: #{tpu_custom_call.1} parent=39 // pred_check
            %p401 = pneg %p398
          $region42: #{tpu_custom_call.1} parent=39 // pred_check_branch
            %403 = sbr.rel (%p401) target = $region44
          $region43: #{tpu_custom_call.1} parent=39 // pred_region
            // Predicated region
            $region45: #{tpu_custom_call.1} parent=43 // pred_check
              _
            $region46: #{tpu_custom_call.1} parent=43 // pred_check_branch
              %405 = sbr.rel (0) target = $region48
            $region47: #{tpu_custom_call.1} parent=43 // pred_region
              // Predicated region
              $region67: #{tpu_custom_call.1} parent=47 // pred_check
                _
              $region68: #{tpu_custom_call.1} parent=47 // pred_check_branch
                %456 = sbr.rel (0) target = $region70
              $region69: #{tpu_custom_call.1} parent=47 // pred_region
                %s457 = sshrl.u32 %s396, 1
                // While loop
                $region71: #{tpu_custom_call.1} parent=69 // loop_pre_header
                  _
                $region72: #{tpu_custom_call.1} parent=69 // loop_header
                  %s459 = sphi 0, %s461
                  %p460 = scmp.ge.s32.totalorder %s459, %s457
                  %s464 = sphi 0, %s473
                  %s465 = sphi %s389, %s476
                  %s466 = sphi %s400, %s477
                $region73: #{tpu_custom_call.1} parent=69 // loop_header_branch
                  %463 = sbr.rel (%p460) target = $region77
                $region74: #{tpu_custom_call.1} parent=69 // loop_body
                  %v467 = vld [vmem:[%s465] sm:$0xff]
                  %468 = vst [vmem:[%s466] sm:$0xff] %v467
                  %v469 = vld [vmem:[%s465 + $0x8] sm:$0xff]
                  %470 = vst [vmem:[%s466 + $0x8] sm:$0xff] %v469
                  %s471 = sadd.s32 1, %s464
                  %p472 = scmp.ge.s32.totalorder %s471, %s457
                  %s473 = scalar_select %p472, 0, %s471
                  %s474 = smul.u32 %s473, 16
                  %s475 = smul.u32 %s473, 16
                  %s476 = scalar_lea.vmem %s389, %s474 [#allocation2]
                  %s477 = scalar_lea.vmem %s400, %s475
                $region75: #{tpu_custom_call.1} parent=69 // loop_footer
                  %s461 = sadd.s32 %s459, 1
                $region76: #{tpu_custom_call.1} parent=69 // loop_footer_branch
                  %458 = sbr.rel target = $region72
                $region77: #{tpu_custom_call.1} parent=69 // loop_exit
                  _
                %s478 = sshrl.u32 %s396, 1
                %s479 = sand.u32 %s396, 1
                %s480 = smul.u32 %s478, 2
                %s481 = smul.u32 8, %s480
                %s482 = scalar_lea.vmem %s389, %s481 [#allocation2]
                %s483 = smul.u32 8, %s480
                %s484 = scalar_lea.vmem %s400, %s483
                // While loop
                $region78: #{tpu_custom_call.1} parent=69 // loop_pre_header
                  _
                $region79: #{tpu_custom_call.1} parent=69 // loop_header
                  %s486 = sphi 0, %s488
                  %p487 = scmp.ge.s32.totalorder %s486, %s479
                  %s491 = sphi 0, %s498
                  %s492 = sphi %s482, %s501
                  %s493 = sphi %s484, %s502
                $region80: #{tpu_custom_call.1} parent=69 // loop_header_branch
                  %490 = sbr.rel (%p487) target = $region84
                $region81: #{tpu_custom_call.1} parent=69 // loop_body
                  %v494 = vld [vmem:[%s492] sm:$0xff]
                  %495 = vst [vmem:[%s493] sm:$0xff] %v494
                  %s496 = sadd.s32 1, %s491
                  %p497 = scmp.ge.s32.totalorder %s496, %s479
                  %s498 = scalar_select %p497, 0, %s496
                  %s499 = smul.u32 %s498, 8
                  %s500 = smul.u32 %s498, 8
                  %s501 = scalar_lea.vmem %s482, %s499 [#allocation2]
                  %s502 = scalar_lea.vmem %s484, %s500
                $region82: #{tpu_custom_call.1} parent=69 // loop_footer
                  %s488 = sadd.s32 %s486, 1
                $region83: #{tpu_custom_call.1} parent=69 // loop_footer_branch
                  %485 = sbr.rel target = $region79
                $region84: #{tpu_custom_call.1} parent=69 // loop_exit
                  _
              $region70: #{tpu_custom_call.1} parent=47 // pred_fallthru
                _
              // Predicated region
              $region85: #{tpu_custom_call.1} parent=47 // pred_check
                _
              $region86: #{tpu_custom_call.1} parent=47 // pred_check_branch
                %504 = sbr.rel target = $region88
              $region87: #{tpu_custom_call.1} parent=47 // pred_region
                _
              $region88: #{tpu_custom_call.1} parent=47 // pred_fallthru
                _
            $region48: #{tpu_custom_call.1} parent=43 // pred_fallthru
              _
            // Predicated region
            $region49: #{tpu_custom_call.1} parent=43 // pred_check
              _
            $region50: #{tpu_custom_call.1} parent=43 // pred_check_branch
              %407 = sbr.rel target = $region52
            $region51: #{tpu_custom_call.1} parent=43 // pred_region
              %s409 = sshrl.u32 %s396, 1
              // While loop
              $region53: #{tpu_custom_call.1} parent=51 // loop_pre_header
                _
              $region54: #{tpu_custom_call.1} parent=51 // loop_header
                %s411 = sphi 0, %s413
                %p412 = scmp.ge.s32.totalorder %s411, %s409
                %s416 = sphi 0, %s425
                %s417 = sphi %s389, %s428
                %s418 = sphi %s400, %s429
              $region55: #{tpu_custom_call.1} parent=51 // loop_header_branch
                %415 = sbr.rel (%p412) target = $region59
              $region56: #{tpu_custom_call.1} parent=51 // loop_body
                %v419 = vld [vmem:[%s417] sm:$0xff]
                %420 = vst [vmem:[%s418] sm:$0xff] %v419
                %v421 = vld [vmem:[%s417 + $0x8] sm:$0xff]
                %422 = vst [vmem:[%s418 + $0x8] sm:$0xff] %v421
                %s423 = sadd.s32 1, %s416
                %p424 = scmp.ge.s32.totalorder %s423, %s409
                %s425 = scalar_select %p424, 0, %s423
                %s426 = smul.u32 %s425, 16
                %s427 = smul.u32 %s425, 16
                %s428 = scalar_lea.vmem %s389, %s426 [#allocation2]
                %s429 = scalar_lea.vmem %s400, %s427
              $region57: #{tpu_custom_call.1} parent=51 // loop_footer
                %s413 = sadd.s32 %s411, 1
              $region58: #{tpu_custom_call.1} parent=51 // loop_footer_branch
                %410 = sbr.rel target = $region54
              $region59: #{tpu_custom_call.1} parent=51 // loop_exit
                _
              %s430 = sshrl.u32 %s396, 1
              %s431 = sand.u32 %s396, 1
              %s432 = smul.u32 %s430, 2
              %s433 = smul.u32 8, %s432
              %s434 = scalar_lea.vmem %s389, %s433 [#allocation2]
              %s435 = smul.u32 8, %s432
              %s436 = scalar_lea.vmem %s400, %s435
              // While loop
              $region60: #{tpu_custom_call.1} parent=51 // loop_pre_header
                _
              $region61: #{tpu_custom_call.1} parent=51 // loop_header
                %s438 = sphi 0, %s440
                %p439 = scmp.ge.s32.totalorder %s438, %s431
                %s443 = sphi 0, %s450
                %s444 = sphi %s434, %s453
                %s445 = sphi %s436, %s454
              $region62: #{tpu_custom_call.1} parent=51 // loop_header_branch
                %442 = sbr.rel (%p439) target = $region66
              $region63: #{tpu_custom_call.1} parent=51 // loop_body
                %v446 = vld [vmem:[%s444] sm:$0xff]
                %447 = vst [vmem:[%s445] sm:$0xff] %v446
                %s448 = sadd.s32 1, %s443
                %p449 = scmp.ge.s32.totalorder %s448, %s431
                %s450 = scalar_select %p449, 0, %s448
                %s451 = smul.u32 %s450, 8
                %s452 = smul.u32 %s450, 8
                %s453 = scalar_lea.vmem %s434, %s451 [#allocation2]
                %s454 = scalar_lea.vmem %s436, %s452
              $region64: #{tpu_custom_call.1} parent=51 // loop_footer
                %s440 = sadd.s32 %s438, 1
              $region65: #{tpu_custom_call.1} parent=51 // loop_footer_branch
                %437 = sbr.rel target = $region61
              $region66: #{tpu_custom_call.1} parent=51 // loop_exit
                _
            $region52: #{tpu_custom_call.1} parent=43 // pred_fallthru
              _
          $region44: #{tpu_custom_call.1} parent=39 // pred_fallthru
            _
          %505 = vnop
        $region40: #{tpu_custom_call.1} parent=35 // pred_fallthru
          _
      $region36: #{tpu_custom_call.1} parent=5 // pred_fallthru
        _
      %p506 = scmp.le.s32.totalorder 2, %s10
      // Predicated region
      $region89: #{tpu_custom_call.1} parent=5 // pred_check
        %p507 = pneg %p506
      $region90: #{tpu_custom_call.1} parent=5 // pred_check_branch
        %509 = sbr.rel (%p507) target = $region92
      $region91: #{tpu_custom_call.1} parent=5 // pred_region
        %s510 = ssub.s32 %s10, 2
        // Predicated region
        $region93: #{tpu_custom_call.1} parent=91 // pred_check
          %p511 = pneg %p128
        $region94: #{tpu_custom_call.1} parent=91 // pred_check_branch
          %513 = sbr.rel (%p511) target = $region96
        $region95: #{tpu_custom_call.1} parent=91 // pred_region
          %s514 = sand.u32 %s113, 1
          %s515 = sand.u32 %s113, 1
          %s516 = smul.addr %s515, 16
          %s517 = scalar_lea.vmem [#allocation2], %s516
        $region96: #{tpu_custom_call.1} parent=91 // pred_fallthru
          _
      $region92: #{tpu_custom_call.1} parent=5 // pred_fallthru
        _
    $region6: #{tpu_custom_call.1} parent=1 // loop_footer
      %s14 = sadd.s32 1, %s10
    $region7: #{tpu_custom_call.1} parent=1 // loop_footer_branch
      %9 = sbr.rel target = $region3
    $region8: #{tpu_custom_call.1} parent=1 // loop_exit
      _

</llo_original>
